<compile_context>
chip_gen: v5e
topology: v5e:2x2
jax: 0.10.0
libtpu: 0.0.40
codegen_flags: <defaults>
</compile_context>

<pallas_src>
import functools

import jax
import jax.numpy as jnp
import numpy as np
from jax.experimental import pallas as pl
from jax.experimental.pallas import tpu as pltpu


# ----------------------------- Pallas kernel ---------------------------------
def _cnn_head_kernel(x_ref, wf_ref, wout_ref, bout_ref, o_ref, *,
                     kernel_sizes, ocs, seq_len):
    """One batch row: fused conv-bank + global max-pool + ReLU + out_proj.

    x_ref    : (1, L, H)     compute dtype (f32 or bf16)
    wf_ref   : (H, T)        compute dtype, T = sum_k k*ocs, columns ordered
                             [k0 tap0 | k0 tap1 | ... | k1 tap0 | ...]
    wout_ref : (n*ocs, NLp)  f32 (zero-padded to lane-dense NLp)
    bout_ref : (1, NLp)      f32 (zero-padded)
    o_ref    : (1, 1, NLp)   f32
    """
    # One large MXU matmul computes every tap of every conv at once: (L, T) f32.
    y = jnp.dot(x_ref[0], wf_ref[...], preferred_element_type=jnp.float32)

    pooled = []
    off = 0
    for k in kernel_sizes:
        l_out = seq_len - k + 1
        # conv_k[p, o] = sum_j y[p + j, tap_j cols][o]  (valid conv, no padding)
        acc = y[0:l_out, off:off + ocs]                       # tap 0 initializes acc
        for j in range(1, k):
            acc = acc + y[j:j + l_out, off + j * ocs:off + (j + 1) * ocs]
        off += k * ocs
        pooled.append(jnp.max(acc, axis=0, keepdims=True))    # global max-pool -> (1, ocs)

    feat = jnp.concatenate(pooled, axis=1)                    # (1, n*ocs)
    feat = jnp.maximum(feat, 0.0)                             # relu(max(x)) == max(relu(x))

    out = jnp.dot(feat, wout_ref[...], preferred_element_type=jnp.float32) + bout_ref[...]
    o_ref[0] = out.astype(o_ref.dtype)                        # lane-dense (1, NLp) store


# ------------------------------- wrapper --------------------------------------
def esm_cnn_head_forward(features, conv_weights, w_out, b_out, kernel_sizes,
                         *, compute_dtype=jnp.float32):
    """features: (B, L, H); conv_weights[i]: (k_i, H, OCS) (tap-major, i.e. the torch
    Conv1d weight (OCS, H, k_i) transposed to (k_i, H, OCS)); w_out: (n*OCS, NL);
    b_out: (NL,) or (1, NL)."""
    B, L, H = features.shape
    OCS = conv_weights[0].shape[-1]
    NL = w_out.shape[-1]
    kernel_sizes = tuple(int(k) for k in kernel_sizes)
    assert L >= max(kernel_sizes), "sequence length must cover the largest conv kernel"

    # ---- fuse every tap of every conv into a single (H, sum_k k*OCS) weight ----
    blocks = []
    for w, k in zip(conv_weights, kernel_sizes):
        # (k, H, OCS) -> (H, k*OCS) with columns [tap0 | tap1 | ... | tap_{k-1}]
        blocks.append(jnp.transpose(w, (1, 0, 2)).reshape(H, k * OCS))
    w_fused = jnp.concatenate(blocks, axis=1).astype(compute_dtype)

    # ---- lane-dense (multiple-of-128) padding of the tiny out_proj -------------
    NLp = ((NL + 127) // 128) * 128
    F = OCS * len(kernel_sizes)
    w_out_p = jnp.zeros((F, NLp), jnp.float32).at[:, :NL].set(w_out.astype(jnp.float32))
    b_out_p = jnp.zeros((1, NLp), jnp.float32).at[:, :NL].set(
        jnp.asarray(b_out, jnp.float32).reshape(1, NL))

    x = features.astype(compute_dtype)

    kernel = functools.partial(_cnn_head_kernel, kernel_sizes=kernel_sizes,
                               ocs=OCS, seq_len=L)

    out = pl.pallas_call(
        kernel,
        out_shape=jax.ShapeDtypeStruct((B, 1, NLp), jnp.float32),
        grid_spec=pltpu.PrefetchScalarGridSpec(
            num_scalar_prefetch=0,
            grid=(B,),  # one batch row per grid step -> double-buffered HBM DMAs
            in_specs=[
                pl.BlockSpec((1, L, H), lambda i: (i, 0, 0)),
                pl.BlockSpec(w_fused.shape, lambda i: (0, 0)),
                pl.BlockSpec(w_out_p.shape, lambda i: (0, 0)),
                pl.BlockSpec(b_out_p.shape, lambda i: (0, 0)),
            ],
            out_specs=pl.BlockSpec((1, 1, NLp), lambda i: (i, 0, 0)),
        ),
        compiler_params=pltpu.CompilerParams(
            # Batch rows are independent -> megacore-shardable on v7x.
            dimension_semantics=("parallel",),
            # NOTE: raise vmem_limit_bytes here when (L, H) tiles grow to ESM scale.
        ),
    )(x, w_fused, w_out_p, b_out_p)

    return out[:, 0, :NL]


# --------------------------- pure-JAX reference --------------------------------
def reference_forward(features, conv_weights, w_out, b_out):
    B, L, H = features.shape
    feats = []
    for w in conv_weights:                                  # w: (k, H, OCS)
        k = w.shape[0]
        l_out = L - k + 1
        out = jnp.zeros((B, l_out, w.shape[-1]), jnp.float32)
        for j in range(k):
            out = out + jnp.einsum("blh,ho->blo", features[:, j:j + l_out, :], w[j],
                                   precision=jax.lax.Precision.HIGHEST)
        out = jnp.maximum(out, 0.0)
        feats.append(jnp.max(out, axis=1))                  # (B, OCS)
    feat = jnp.concatenate(feats, axis=1)
    return (jnp.dot(feat, w_out, precision=jax.lax.Precision.HIGHEST)
            + jnp.asarray(b_out).reshape(1, -1))


# --------------------------------- main ----------------------------------------
if __name__ == "__main__":
    # Small config consistent with the module.
    B, L, H = 2, 16, 32          # batch, seq_len, hidden_size
    OCS = 8                      # out_channels per conv
    KERNEL_SIZES = (2, 3, 5)
    NUM_LABELS = 4

    key = jax.random.PRNGKey(0)
    k_x, k_w, k_o, k_b = jax.random.split(key, 4)

    features = jax.random.normal(k_x, (B, L, H), dtype=jnp.float32)

    # Deterministic synthetic parameters (PyTorch shapes, re-laid-out):
    #   nn.Conv1d weight: (OCS, H, k)  ->  (k, H, OCS)
    #   nn.Linear weight: (NL, F)      ->  (F, NL);  bias: (NL,) -> (1, NL)
    conv_weights = []
    for i, ks in enumerate(KERNEL_SIZES):
        w_torch_layout = (
            jax.random.normal(jax.random.fold_in(k_w, i), (OCS, H, ks), dtype=jnp.float32)
            * 0.05
        )
        conv_weights.append(jnp.transpose(w_torch_layout, (2, 1, 0)))  # (k, H, OCS)

    F_dim = OCS * len(KERNEL_SIZES)
    w_out_torch = jax.random.normal(k_o, (NUM_LABELS, F_dim), dtype=jnp.float32) * 0.05
    w_out = jnp.transpose(w_out_torch, (1, 0))                          # (F, NL)
    b_out = (jax.random.normal(k_b, (NUM_LABELS,), dtype=jnp.float32) * 0.05).reshape(
        1, NUM_LABELS
    )

    ref = jax.block_until_ready(reference_forward(features, conv_weights, w_out, b_out))

    # Full-precision path (fp32 matmul inputs).
    out_f32 = jax.block_until_ready(
        esm_cnn_head_forward(features, conv_weights, w_out, b_out, KERNEL_SIZES,
                             compute_dtype=jnp.float32))
    np.testing.assert_allclose(np.asarray(out_f32), np.asarray(ref), rtol=2e-3, atol=2e-3)

    # Bandwidth-optimized path (bf16 matmul inputs, f32 accumulation).
    out_bf16 = jax.block_until_ready(
        esm_cnn_head_forward(features, conv_weights, w_out, b_out, KERNEL_SIZES,
                             compute_dtype=jnp.bfloat16))
    np.testing.assert_allclose(np.asarray(out_bf16), np.asarray(ref), rtol=5e-2, atol=5e-2)

    print("KERNEL_OK")
</pallas_src>

<mosaic_0001>
module attributes {stable_mosaic.version = 11 : i64} {
  func.func @_cnn_head_kernel(%arg0: i32, %arg1: memref<1x16x32xf32, #tpu.memory_space<vmem>>, %arg2: memref<32x80xf32, #tpu.memory_space<vmem>>, %arg3: memref<24x128xf32, #tpu.memory_space<vmem>>, %arg4: memref<1x128xf32, #tpu.memory_space<vmem>>, %arg5: memref<1x1x128xf32, #tpu.memory_space<vmem>>) attributes {dimension_semantics = [#tpu.dimension_semantics<parallel>], iteration_bounds = array<i64: 2>, scalar_prefetch = 0 : i64, scratch_operands = 0 : i64, tpu.core_type = #tpu.core_type<tc>, window_params = [{transform_indices = @transform_0, window_bounds = array<i64: 1, 16, 32>}, {pipeline_mode = #tpu.pipeline_mode<synchronous>, transform_indices = @transform_1, window_bounds = array<i64: 32, 80>}, {pipeline_mode = #tpu.pipeline_mode<synchronous>, transform_indices = @transform_2, window_bounds = array<i64: 24, 128>}, {pipeline_mode = #tpu.pipeline_mode<synchronous>, transform_indices = @transform_3, window_bounds = array<i64: 1, 128>}, {transform_indices = @transform_4, window_bounds = array<i64: 1, 1, 128>}]} {
    %c0 = arith.constant 0 : index
    %c0_0 = arith.constant 0 : index
    %c0_1 = arith.constant 0 : index
    %0 = vector.load %arg1[%c0, %c0_0, %c0_1] : memref<1x16x32xf32, #tpu.memory_space<vmem>>, vector<1x16x32xf32>
    %1 = vector.shape_cast %0 : vector<1x16x32xf32> to vector<16x32xf32>
    %c0_2 = arith.constant 0 : index
    %c0_3 = arith.constant 0 : index
    %2 = vector.load %arg2[%c0_2, %c0_3] : memref<32x80xf32, #tpu.memory_space<vmem>>, vector<32x80xf32>
    %cst = arith.constant dense<0.000000e+00> : vector<16x80xf32>
    %3 = tpu.matmul %1, %2, %cst {dimension_numbers = #tpu.dot_dimension_numbers<[1], [0], [0], [1], [0, 0, 1, 1], [], []>} : vector<16x32xf32>, vector<32x80xf32>, vector<16x80xf32> -> vector<16x80xf32>
    %4 = vector.extract_strided_slice %3 {offsets = [0, 0], sizes = [15, 8], strides = [1, 1]} : vector<16x80xf32> to vector<15x8xf32>
    %5 = vector.extract_strided_slice %3 {offsets = [1, 8], sizes = [15, 8], strides = [1, 1]} : vector<16x80xf32> to vector<15x8xf32>
    %6 = arith.addf %4, %5 : vector<15x8xf32>
    %cst_4 = arith.constant dense<0xFF800000> : vector<8xf32>
    %7 = vector.multi_reduction <maximumf>, %6, %cst_4 [0] : vector<15x8xf32> to vector<8xf32>
    %8 = vector.shape_cast %7 : vector<8xf32> to vector<1x8xf32>
    %9 = vector.extract_strided_slice %3 {offsets = [0, 16], sizes = [14, 8], strides = [1, 1]} : vector<16x80xf32> to vector<14x8xf32>
    %10 = vector.extract_strided_slice %3 {offsets = [1, 24], sizes = [14, 8], strides = [1, 1]} : vector<16x80xf32> to vector<14x8xf32>
    %11 = arith.addf %9, %10 : vector<14x8xf32>
    %12 = vector.extract_strided_slice %3 {offsets = [2, 32], sizes = [14, 8], strides = [1, 1]} : vector<16x80xf32> to vector<14x8xf32>
    %13 = arith.addf %11, %12 : vector<14x8xf32>
    %cst_5 = arith.constant dense<0xFF800000> : vector<8xf32>
    %14 = vector.multi_reduction <maximumf>, %13, %cst_5 [0] : vector<14x8xf32> to vector<8xf32>
    %15 = vector.shape_cast %14 : vector<8xf32> to vector<1x8xf32>
    %16 = vector.extract_strided_slice %3 {offsets = [0, 40], sizes = [12, 8], strides = [1, 1]} : vector<16x80xf32> to vector<12x8xf32>
    %17 = vector.extract_strided_slice %3 {offsets = [1, 48], sizes = [12, 8], strides = [1, 1]} : vector<16x80xf32> to vector<12x8xf32>
    %18 = arith.addf %16, %17 : vector<12x8xf32>
    %19 = vector.extract_strided_slice %3 {offsets = [2, 56], sizes = [12, 8], strides = [1, 1]} : vector<16x80xf32> to vector<12x8xf32>
    %20 = arith.addf %18, %19 : vector<12x8xf32>
    %21 = vector.extract_strided_slice %3 {offsets = [3, 64], sizes = [12, 8], strides = [1, 1]} : vector<16x80xf32> to vector<12x8xf32>
    %22 = arith.addf %20, %21 : vector<12x8xf32>
    %23 = vector.extract_strided_slice %3 {offsets = [4, 72], sizes = [12, 8], strides = [1, 1]} : vector<16x80xf32> to vector<12x8xf32>
    %24 = arith.addf %22, %23 : vector<12x8xf32>
    %cst_6 = arith.constant dense<0xFF800000> : vector<8xf32>
    %25 = vector.multi_reduction <maximumf>, %24, %cst_6 [0] : vector<12x8xf32> to vector<8xf32>
    %26 = vector.shape_cast %25 : vector<8xf32> to vector<1x8xf32>
    %27 = tpu.concatenate %8, %15, %26 in 1 : vector<1x8xf32>, vector<1x8xf32>, vector<1x8xf32> -> vector<1x24xf32>
    %cst_7 = arith.constant 0.000000e+00 : f32
    %28 = vector.broadcast %cst_7 : f32 to vector<1x24xf32>
    %29 = arith.maximumf %27, %28 : vector<1x24xf32>
    %c0_8 = arith.constant 0 : index
    %c0_9 = arith.constant 0 : index
    %30 = vector.load %arg3[%c0_8, %c0_9] : memref<24x128xf32, #tpu.memory_space<vmem>>, vector<24x128xf32>
    %cst_10 = arith.constant dense<0.000000e+00> : vector<1x128xf32>
    %31 = tpu.matmul %29, %30, %cst_10 {dimension_numbers = #tpu.dot_dimension_numbers<[1], [0], [0], [1], [0, 0, 1, 1], [], []>} : vector<1x24xf32>, vector<24x128xf32>, vector<1x128xf32> -> vector<1x128xf32>
    %c0_11 = arith.constant 0 : index
    %c0_12 = arith.constant 0 : index
    %32 = vector.load %arg4[%c0_11, %c0_12] : memref<1x128xf32, #tpu.memory_space<vmem>>, vector<1x128xf32>
    %33 = arith.addf %31, %32 : vector<1x128xf32>
    %c0_13 = arith.constant 0 : index
    %c0_14 = arith.constant 0 : index
    %c0_15 = arith.constant 0 : index
    %34 = vector.load %arg5[%c0_13, %c0_14, %c0_15] : memref<1x1x128xf32, #tpu.memory_space<vmem>>, vector<1x1x128xf32>
    %35 = vector.shape_cast %34 : vector<1x1x128xf32> to vector<1x128xf32>
    %36 = vector.shape_cast %33 : vector<1x128xf32> to vector<1x1x128xf32>
    tpu.vector_store %arg5[%c0_13, %c0_14, %c0_15], %36 {strides = array<i32>} : memref<1x1x128xf32, #tpu.memory_space<vmem>>, vector<1x1x128xf32>,
    return
  }
  func.func @transform_0(%arg0: i32) -> (i32, i32, i32) {
    %c0_i32 = arith.constant 0 : i32
    %c0_i32_0 = arith.constant 0 : i32
    %c0_i32_1 = arith.constant 0 : i32
    return %arg0, %c0_i32, %c0_i32_0 : i32, i32, i32
  }
  func.func @transform_1(%arg0: i32) -> (i32, i32) {
    %c0_i32 = arith.constant 0 : i32
    %c0_i32_0 = arith.constant 0 : i32
    %c0_i32_1 = arith.constant 0 : i32
    return %c0_i32, %c0_i32_0 : i32, i32
  }
  func.func @transform_2(%arg0: i32) -> (i32, i32) {
    %c0_i32 = arith.constant 0 : i32
    %c0_i32_0 = arith.constant 0 : i32
    %c0_i32_1 = arith.constant 0 : i32
    return %c0_i32, %c0_i32_0 : i32, i32
  }
  func.func @transform_3(%arg0: i32) -> (i32, i32) {
    %c0_i32 = arith.constant 0 : i32
    %c0_i32_0 = arith.constant 0 : i32
    %c0_i32_1 = arith.constant 0 : i32
    return %c0_i32, %c0_i32_0 : i32, i32
  }
  func.func @transform_4(%arg0: i32) -> (i32, i32, i32) {
    %c0_i32 = arith.constant 0 : i32
    %c0_i32_0 = arith.constant 0 : i32
    %c0_i32_1 = arith.constant 0 : i32
    return %arg0, %c0_i32, %c0_i32_0 : i32, i32, i32
  }
}

</mosaic_0001>

<llo_original>
// kernel: tpu_custom_call.1
$region0: #{tpu_custom_call.1}
  #allocation0 [shape = 'u32[]', space=smem, size = 0x4, offset = 0x4, fixed_abs, tag = 'smem constant byte address 0x4 - core index']
  #allocation1 [shape = 'u32[72,128]{1,0:T(1,128)}', space=vmem, size = 0x9000, scoped, tag = 'internal scratch']
  %s0 = inlined_call_operand.hbm [shape: f32[2,16,32], index: 0, kind: input, shape index: {}]
  %s1 = inlined_call_operand.hbm [shape: f32[32,80], index: 1, kind: input, shape index: {}]
  %s2 = inlined_call_operand.hbm [shape: f32[24,128], index: 2, kind: input, shape index: {}]
  %s3 = inlined_call_operand.vmem [shape: f32[1,128], index: 3, kind: input, shape index: {}]
  %s4 = inlined_call_operand.hbm [shape: f32[2,1,128], index: 4, kind: output, shape index: {}]
  %s5 = sld [smem:[#allocation0]]
  $region61: #{tpu_custom_call.1} parent=0
    _
  %s7 = ssub.s32 1, %s5
  %s8 = scalar_select 0, %s7, %s5
  $region1: #{tpu_custom_call.1} parent=0
    #allocation2 [shape = 'u8[16384]{0}', space=vmem, size = 0x4000, scoped, tag = 'input window, operand 0']
    #allocation3 [shape = 's32[2]{0}', space=sflag, size = 0x8, scoped, tag = 'scoped memory for tpu_custom_call.1']
    #allocation4 [shape = 's32[2]{0}', space=sflag, size = 0x8, scoped, tag = 'scoped memory for tpu_custom_call.1']
    #allocation5 [shape = 'u8[16384]{0}', space=vmem, size = 0x4000, scoped, tag = 'input window, operand 1, single buffered']
    #allocation6 [shape = 's32[1]{0}', space=sflag, size = 0x4, scoped, tag = 'scoped memory for tpu_custom_call.1']
    #allocation7 [shape = 'u8[12288]{0}', space=vmem, size = 0x3000, scoped, tag = 'input window, operand 2, single buffered']
    #allocation8 [shape = 'u8[1024]{0}', space=vmem, size = 0x400, scoped, tag = 'output window, operand 0']
    %9 = vsyncpa [#allocation3], 0
    %s10 = scalar_lea.sflag [#allocation3], 1
    %11 = vsyncpa %s10, 0
    %12 = vsyncpa [#allocation6], 0
    %13 = vsyncpa [#allocation4], 0
    %s14 = scalar_lea.sflag [#allocation4], 1
    %15 = vsyncpa %s14, 0
    loop: start=0, step=1, limit=4
    $region2: #{tpu_custom_call.1} parent=1 // loop_pre_header
      _
    $region3: #{tpu_custom_call.1} parent=1 // loop_header
      %s17 = sphi 0, %s21
      %p18 = scmp.ge.s32.totalorder %s17, 4
      %s27 = sphi 0, %s29
      %s30 = sphi 0, %s27
      %s31 = sphi 0, %s30
      %s47 = sphi 0, %s31
      %s51 = sphi 0, %s51
      %s53 = sphi 0, %s51
      %s54 = sphi 0, %s53
      %s68 = sphi 0, %s54
      %s72 = sphi 0, %s72
      %s74 = sphi 0, %s72
      %s75 = sphi 0, %s74
      %s89 = sphi 0, %s75
      %s93 = sphi 0, %s93
      %s95 = sphi 0, %s93
      %s96 = sphi 0, %s95
      %s110 = sphi 0, %s96
      %s116 = sphi 0, %s118
      %s119 = sphi 0, %s116
      %s120 = sphi 0, %s119
      %s136 = sphi 0, %s120
    $region4: #{tpu_custom_call.1} parent=1 // loop_header_branch
      %20 = sbr.rel (%p18) target = $region8
    $region5: #{tpu_custom_call.1} parent=1 // loop_body
      %s22 = ssub.s32 %s17, 1
      %s23 = ssub.s32 %s17, 2
      %s24 = sadd.s32 %s17, 1
      %s25 = ssub.s32 %s17, %s24
      %p26 = scmp.eq.s32.totalorder %s25, 0
      %s28 = sadd.s32 %s27, 1
      %s29 = scalar_select %p26, %s27, %s28
      %p32 = pneg %p26
      %p33 = scmp.eq.s32.totalorder %s17, 1
      %p34 = por %p32, %p33
      %p35 = scmp.ne.s32.totalorder %s27, %s30
      %p36 = scmp.eq.s32.totalorder %s17, 0
      %p37 = por %p35, %p36
      %p38 = scmp.ne.s32.totalorder %s27, %s30
      %p39 = scmp.eq.s32.totalorder %s22, 1
      %p40 = por %p38, %p39
      %p41 = scmp.ne.s32.totalorder %s30, %s31
      %p42 = scmp.eq.s32.totalorder %s22, 0
      %p43 = por %p41, %p42
      %p44 = scmp.ne.s32.totalorder %s30, %s31
      %p45 = scmp.eq.s32.totalorder %s23, 1
      %p46 = por %p44, %p45
      %p48 = scmp.ne.s32.totalorder %s31, %s47
      %p49 = scmp.eq.s32.totalorder %s23, 0
      %p50 = por %p48, %p49
      %s52 = sadd.s32 %s51, 1
      %p55 = scmp.eq.s32.totalorder %s17, 1
      %p56 = scmp.ne.s32.totalorder %s51, %s53
      %p57 = scmp.eq.s32.totalorder %s17, 0
      %p58 = por %p56, %p57
      %p59 = scmp.ne.s32.totalorder %s51, %s53
      %p60 = scmp.eq.s32.totalorder %s22, 1
      %p61 = por %p59, %p60
      %p62 = scmp.ne.s32.totalorder %s53, %s54
      %p63 = scmp.eq.s32.totalorder %s22, 0
      %p64 = por %p62, %p63
      %p65 = scmp.ne.s32.totalorder %s53, %s54
      %p66 = scmp.eq.s32.totalorder %s23, 1
      %p67 = por %p65, %p66
      %p69 = scmp.ne.s32.totalorder %s54, %s68
      %p70 = scmp.eq.s32.totalorder %s23, 0
      %p71 = por %p69, %p70
      %s73 = sadd.s32 %s72, 1
      %p76 = scmp.eq.s32.totalorder %s17, 1
      %p77 = scmp.ne.s32.totalorder %s72, %s74
      %p78 = scmp.eq.s32.totalorder %s17, 0
      %p79 = por %p77, %p78
      %p80 = scmp.ne.s32.totalorder %s72, %s74
      %p81 = scmp.eq.s32.totalorder %s22, 1
      %p82 = por %p80, %p81
      %p83 = scmp.ne.s32.totalorder %s74, %s75
      %p84 = scmp.eq.s32.totalorder %s22, 0
      %p85 = por %p83, %p84
      %p86 = scmp.ne.s32.totalorder %s74, %s75
      %p87 = scmp.eq.s32.totalorder %s23, 1
      %p88 = por %p86, %p87
      %p90 = scmp.ne.s32.totalorder %s75, %s89
      %p91 = scmp.eq.s32.totalorder %s23, 0
      %p92 = por %p90, %p91
      %s94 = sadd.s32 %s93, 1
      %p97 = scmp.eq.s32.totalorder %s17, 1
      %p98 = scmp.ne.s32.totalorder %s93, %s95
      %p99 = scmp.eq.s32.totalorder %s17, 0
      %p100 = por %p98, %p99
      %p101 = scmp.ne.s32.totalorder %s93, %s95
      %p102 = scmp.eq.s32.totalorder %s22, 1
      %p103 = por %p101, %p102
      %p104 = scmp.ne.s32.totalorder %s95, %s96
      %p105 = scmp.eq.s32.totalorder %s22, 0
      %p106 = por %p104, %p105
      %p107 = scmp.ne.s32.totalorder %s95, %s96
      %p108 = scmp.eq.s32.totalorder %s23, 1
      %p109 = por %p107, %p108
      %p111 = scmp.ne.s32.totalorder %s96, %s110
      %p112 = scmp.eq.s32.totalorder %s23, 0
      %p113 = por %p111, %p112
      %s114 = ssub.s32 %s17, %s24
      %p115 = scmp.eq.s32.totalorder %s114, 0
      %s117 = sadd.s32 %s116, 1
      %s118 = scalar_select %p115, %s116, %s117
      %p121 = pneg %p115
      %p122 = scmp.eq.s32.totalorder %s17, 1
      %p123 = por %p121, %p122
      %p124 = scmp.ne.s32.totalorder %s116, %s119
      %p125 = scmp.eq.s32.totalorder %s17, 0
      %p126 = por %p124, %p125
      %p127 = scmp.ne.s32.totalorder %s116, %s119
      %p128 = scmp.eq.s32.totalorder %s22, 1
      %p129 = por %p127, %p128
      %p130 = scmp.ne.s32.totalorder %s119, %s120
      %p131 = scmp.eq.s32.totalorder %s22, 0
      %p132 = por %p130, %p131
      %p133 = scmp.ne.s32.totalorder %s119, %s120
      %p134 = scmp.eq.s32.totalorder %s23, 1
      %p135 = por %p133, %p134
      %p137 = scmp.ne.s32.totalorder %s120, %s136
      %p138 = scmp.eq.s32.totalorder %s23, 0
      %p139 = por %p137, %p138
      %p140 = scmp.le.s32.totalorder 1, %s17
      %p141 = scmp.lt.s32.totalorder %s17, 3
      %p142 = pnand %p140, %p141
      %p143 = pneg %p142
      // Predicated region
      $region9: #{tpu_custom_call.1} parent=5 // pred_check
        _
      $region10: #{tpu_custom_call.1} parent=5 // pred_check_branch
        %145 = sbr.rel (%p142) target = $region12
      $region11: #{tpu_custom_call.1} parent=5 // pred_region
        %s146 = ssub.s32 %s17, 1
        // Predicated region
        $region13: #{tpu_custom_call.1} parent=11 // pred_check
          %p147 = pneg %p64
        $region14: #{tpu_custom_call.1} parent=11 // pred_check_branch
          %149 = sbr.rel (%p147) target = $region16
        $region15: #{tpu_custom_call.1} parent=11 // pred_region
          %151 = vsyncadd [#allocation6], 0
          %s152 = sshll.u32 %s1, 4
          %s153 = int_to_ptr.hbm [resolvable:$true] %s152
          %s154 = sshll.u32 [#allocation5], 4
          %s155 = int_to_ptr.vmem [resolvable:$true] %s154
          %160 = dma.hbm_to_vmem [thread:$0]  %s153, 512, %s155, [#allocation6], 128, 128, 8
        $region16: #{tpu_custom_call.1} parent=11 // pred_fallthru
          _
        // Predicated region
        $region17: #{tpu_custom_call.1} parent=11 // pred_check
          %p161 = pneg %p85
        $region18: #{tpu_custom_call.1} parent=11 // pred_check_branch
          %163 = sbr.rel (%p161) target = $region20
        $region19: #{tpu_custom_call.1} parent=11 // pred_region
          %165 = vsyncadd [#allocation6], 0
          %s166 = sshll.u32 %s2, 4
          %s167 = int_to_ptr.hbm [resolvable:$true] %s166
          %s168 = sshll.u32 [#allocation7], 4
          %s169 = int_to_ptr.vmem [resolvable:$true] %s168
          %174 = dma.hbm_to_vmem [thread:$0]  %s167, 384, %s169, [#allocation6], 128, 128, 8
        $region20: #{tpu_custom_call.1} parent=11 // pred_fallthru
          _
        // Predicated region
        $region21: #{tpu_custom_call.1} parent=11 // pred_check
          %p175 = pneg %p106
        $region22: #{tpu_custom_call.1} parent=11 // pred_check_branch
          %177 = sbr.rel (%p175) target = $region24
        $region23: #{tpu_custom_call.1} parent=11 // pred_region
          _
        $region24: #{tpu_custom_call.1} parent=11 // pred_fallthru
          _
      $region12: #{tpu_custom_call.1} parent=5 // pred_fallthru
        _
      %p178 = scmp.lt.s32.totalorder %s17, 2
      // Predicated region
      $region25: #{tpu_custom_call.1} parent=5 // pred_check
        %p179 = pneg %p178
      $region26: #{tpu_custom_call.1} parent=5 // pred_check_branch
        %181 = sbr.rel (%p179) target = $region28
      $region27: #{tpu_custom_call.1} parent=5 // pred_region
        // Predicated region
        $region29: #{tpu_custom_call.1} parent=27 // pred_check
          %p182 = pneg %p37
        $region30: #{tpu_custom_call.1} parent=27 // pred_check_branch
          %184 = sbr.rel (%p182) target = $region32
        $region31: #{tpu_custom_call.1} parent=27 // pred_region
          %s185 = sand.u32 %s27, 1
          %s186 = scalar_lea.sflag [#allocation3], %s185
          %s187 = sand.u32 %s27, 1
          %s188 = smul.addr %s187, 16
          %s189 = scalar_lea.vmem [#allocation2], %s188
          %191 = vsyncadd %s186, 0
          %s192 = smul.addr %s17, 2
          %s193 = smul.addr %s192, 8
          %s194 = scalar_lea.hbm %s0, %s193
          %s195 = sshll.u32 %s194, 4
          %s196 = int_to_ptr.hbm [resolvable:$true] %s195
          %s197 = sshll.u32 %s189, 4
          %s198 = int_to_ptr.vmem [resolvable:$true] %s197
          %203 = dma.hbm_to_vmem [thread:$0]  %s196, 256, %s198, %s186, 128, 128, 8
        $region32: #{tpu_custom_call.1} parent=27 // pred_fallthru
          _
      $region28: #{tpu_custom_call.1} parent=5 // pred_fallthru
        _
      %p204 = scmp.le.s32.totalorder 1, %s17
      %p205 = scmp.lt.s32.totalorder %s17, 3
      %p206 = pnand %p204, %p205
      %p207 = pneg %p206
      // Predicated region
      $region33: #{tpu_custom_call.1} parent=5 // pred_check
        _
      $region34: #{tpu_custom_call.1} parent=5 // pred_check_branch
        %209 = sbr.rel (%p206) target = $region36
      $region35: #{tpu_custom_call.1} parent=5 // pred_region
        %s210 = ssub.s32 %s17, 1
        %s211 = sand.u32 %s30, 1
        %s212 = scalar_lea.sflag [#allocation3], %s211
        %s213 = sand.u32 %s30, 1
        %s214 = smul.addr %s213, 16
        %s215 = scalar_lea.vmem [#allocation2], %s214
        // Predicated region
        $region37: #{tpu_custom_call.1} parent=35 // pred_check
          %p216 = pneg %p43
        $region38: #{tpu_custom_call.1} parent=35 // pred_check_branch
          %218 = sbr.rel (%p216) target = $region40
        $region39: #{tpu_custom_call.1} parent=35 // pred_region
          %220 = dma.done %s212, 256
        $region40: #{tpu_custom_call.1} parent=35 // pred_fallthru
          _
        // Predicated region
        $region41: #{tpu_custom_call.1} parent=35 // pred_check
          %p221 = pneg %p64
        $region42: #{tpu_custom_call.1} parent=35 // pred_check_branch
          %223 = sbr.rel (%p221) target = $region44
        $region43: #{tpu_custom_call.1} parent=35 // pred_region
          %225 = dma.done [#allocation6], 512
        $region44: #{tpu_custom_call.1} parent=35 // pred_fallthru
          _
        // Predicated region
        $region45: #{tpu_custom_call.1} parent=35 // pred_check
          %p226 = pneg %p85
        $region46: #{tpu_custom_call.1} parent=35 // pred_check_branch
          %228 = sbr.rel (%p226) target = $region48
        $region47: #{tpu_custom_call.1} parent=35 // pred_region
          %230 = dma.done [#allocation6], 384
        $region48: #{tpu_custom_call.1} parent=35 // pred_fallthru
          _
        %s231 = sand.u32 %s30, 1
        %s232 = scalar_lea.sflag [#allocation3], %s231
        %s233 = sand.u32 %s30, 1
        %s234 = smul.addr %s233, 16
        %s235 = scalar_lea.vmem [#allocation2], %s234
        %p236 = pneg %p43
        %p237 = pneg %p40
        %p238 = pneg %p64
        %p239 = pneg %p61
        %p240 = pneg %p85
        %p241 = pneg %p82
        %p242 = pneg %p106
        %p243 = pneg %p103
        %p244 = pneg %p132
        %p245 = pneg %p129
        %s246 = sand.u32 %s119, 1
        %s247 = scalar_lea.sflag [#allocation4], %s246
        %s248 = sand.u32 %s119, 1
        %s249 = scalar_lea.vmem [#allocation8], %s248
        %v250 = vld [vmem:[%s215] sm:$0xff]
        %v251 = vld [vmem:[%s215 + $0x8] sm:$0xff]
        %v252 = vld [vmem:[#allocation5] sm:$0xff]
        %v253 = vld [vmem:[#allocation5 + $0x8] sm:$0xff]
        %v254 = vld [vmem:[#allocation5 + $0x10] sm:$0xff]
        %v255 = vld [vmem:[#allocation5 + $0x18] sm:$0xff]
        %vm256 = vcmask 261120
        %v258 = vsel %vm256, %v250, 0
        %v261 = vsel %vm256, %v251, 0
        %263 = vmatpush.msra.mxu0 0.0
        %264 = vmatpush.msra.mxu0 0.0
        %265 = vmatpush.msra.mxu0 0.0
        %266 = vmatpush.msra.mxu0 0.0
        %267 = vmatpush.msra.mxu0 0.0
        %268 = vmatpush.msra.mxu0 0.0
        %269 = vmatpush.msra.mxu0 0.0
        %270 = vmatpush.msra.mxu0 0.0
        %271 = vmatpush.msra.mxu0 0.0
        %272 = vmatpush.msra.mxu0 0.0
        %273 = vmatpush.msra.mxu0 0.0
        %274 = vmatpush.msra.mxu0 0.0
        %275 = vmatpush.msra.mxu0 %v255
        %276 = vmatpush.msra.mxu0 %v254
        %277 = vmatpush.msra.mxu0 %v253
        %278 = vmatpush.msra.mxu0 %v252
        %279 = vmatmul.f32.gmra.mxu0 %v258
        %v280 = vpop.f32.mrf.mxu0
        %v281 = vadd.f32 0.0, %v280
        %282 = vmatmul.f32.gmra.mxu0 %v261
        %v283 = vpop.f32.mrf.mxu0
        %v284 = vadd.f32 0.0, %v283
        %285 = vdwg.mxu0
        %vm288 = vcmask 1046528
        %v289 = vrot.slane %v281, 1
        %v290 = vrot.slane %v284, 1
        %v291 = vsel %vm288, %v289, %v290
        %292 = vrot.lane.b32.xlu0 %v291, 120
        %v293 = vpop.permute.xlu0 %292
        %294 = vrot.lane.b32.xlu0 %v290, 120
        %v295 = vpop.permute.xlu0 %294
        %v298 = vadd.f32 %v281, %v293
        %v299 = vadd.f32 %v284, %v295
        %vm300 = vcmask 64512
        %v301 = vsel %vm300, %v298, -inf
        %vm302 = vcmask 63488
        %v303 = vsel %vm302, %v299, -inf
        %v304 = vmax.f32 %v301, %v303
        %v305 = vrot.slane %v304, 4
        %v306 = vmax.f32 %v304, %v305
        %v307 = vrot.slane %v306, 2
        %v308 = vmax.f32 %v306, %v307
        %v309 = vrot.slane %v308, 1
        %v310 = vmax.f32 %v308, %v309
        %vm311 = vcmask 1045504
        %v312 = vrot.slane %v281, 2
        %v313 = vrot.slane %v284, 2
        %v314 = vsel %vm311, %v312, %v313
        %315 = vrot.lane.b32.xlu0 %v314, 112
        %v316 = vpop.permute.xlu0 %315
        %317 = vrot.lane.b32.xlu0 %v313, 112
        %v318 = vpop.permute.xlu0 %317
        %v321 = vadd.f32 %v298, %v316
        %v322 = vadd.f32 %v299, %v318
        %vm323 = vcmask 195712
        %v324 = vsel %vm323, %v321, -inf
        %vm325 = vcmask 193664
        %v326 = vsel %vm325, %v322, -inf
        %v327 = vmax.f32 %v324, %v326
        %v328 = vrot.slane %v327, 4
        %v329 = vmax.f32 %v327, %v328
        %v330 = vrot.slane %v329, 2
        %v331 = vmax.f32 %v329, %v330
        %v332 = vrot.slane %v331, 1
        %v333 = vmax.f32 %v331, %v332
        %vm334 = vcmask 1044480
        %v335 = vrot.slane %v281, 3
        %v336 = vrot.slane %v284, 3
        %v337 = vsel %vm334, %v335, %v336
        %338 = vrot.lane.b32.xlu0 %v337, 104
        %v339 = vpop.permute.xlu0 %338
        %340 = vrot.lane.b32.xlu0 %v336, 104
        %v341 = vpop.permute.xlu0 %340
        %v344 = vadd.f32 %v321, %v339
        %v345 = vadd.f32 %v322, %v341
        %vm346 = vcmask 1043456
        %v347 = vrot.slane %v281, 4
        %v348 = vrot.slane %v284, 4
        %v349 = vsel %vm346, %v347, %v348
        %350 = vrot.lane.b32.xlu0 %v349, 96
        %v351 = vpop.permute.xlu0 %350
        %352 = vrot.lane.b32.xlu0 %v348, 96
        %v353 = vpop.permute.xlu0 %352
        %v356 = vadd.f32 %v344, %v351
        %v357 = vadd.f32 %v345, %v353
        %vm358 = vcmask 392512
        %v359 = vsel %vm358, %v356, -inf
        %vm360 = vcmask 388416
        %v361 = vsel %vm360, %v357, -inf
        %v362 = vmax.f32 %v359, %v361
        %v363 = vrot.slane %v362, 4
        %v364 = vmax.f32 %v362, %v363
        %v365 = vrot.slane %v364, 2
        %v366 = vmax.f32 %v364, %v365
        %v367 = vrot.slane %v366, 1
        %v368 = vmax.f32 %v366, %v367
        %370 = vrot.lane.b32.xlu0 %v333, 120
        %v371 = vpop.permute.xlu0 %370
        %374 = vrot.lane.b32.xlu0 %v368, 104
        %v375 = vpop.permute.xlu0 %374
        %v377 = vsel %vm300, %v310, %v371
        %vm378 = vcmask 130048
        %v379 = vsel %vm378, %v377, %v375
        %v380 = vmax.f32 %v379, 0.0
        %v381 = vld [vmem:[#allocation7] sm:$0xff]
        %v382 = vld [vmem:[#allocation7 + $0x8] sm:$0xff]
        %v383 = vld [vmem:[#allocation7 + $0x10] sm:$0xff]
        %v384 = vld [vmem:[%s3] sm:$0x1]
        %vm385 = vcmask 195584
        %v387 = vsel %vm385, %v380, 0
        %389 = vmatpush.msra.mxu0 0.0
        %390 = vmatpush.msra.mxu0 0.0
        %391 = vmatpush.msra.mxu0 0.0
        %392 = vmatpush.msra.mxu0 0.0
        %393 = vmatpush.msra.mxu0 0.0
        %394 = vmatpush.msra.mxu0 0.0
        %395 = vmatpush.msra.mxu0 0.0
        %396 = vmatpush.msra.mxu0 0.0
        %397 = vmatpush.msra.mxu0 0.0
        %398 = vmatpush.msra.mxu0 0.0
        %399 = vmatpush.msra.mxu0 0.0
        %400 = vmatpush.msra.mxu0 0.0
        %401 = vmatpush.msra.mxu0 0.0
        %402 = vmatpush.msra.mxu0 %v383
        %403 = vmatpush.msra.mxu0 %v382
        %404 = vmatpush.msra.mxu0 %v381
        %405 = vmatmul.f32.gmra.mxu0 %v387
        %v406 = vpop.f32.mrf.mxu0
        %v407 = vadd.f32 %v384, %v406
        %408 = vdwg.mxu0
        %409 = vst [vmem:[%s249] sm:$0x1] %v407
        %s410 = sand.u32 %s119, 1
        %s411 = scalar_lea.sflag [#allocation4], %s410
        %s412 = sand.u32 %s119, 1
        %s413 = scalar_lea.vmem [#allocation8], %s412
        // Predicated region
        $region49: #{tpu_custom_call.1} parent=35 // pred_check
          %p414 = pneg %p129
        $region50: #{tpu_custom_call.1} parent=35 // pred_check_branch
          %416 = sbr.rel (%p414) target = $region52
        $region51: #{tpu_custom_call.1} parent=35 // pred_region
          %418 = vsyncadd %s411, 0
          %s419 = scalar_lea.hbm %s4, %s22
          %s421 = sshll.u32 %s413, 4
          %s422 = int_to_ptr.vmem [resolvable:$true] %s421
          %s423 = sshll.u32 %s419, 4
          %s424 = int_to_ptr.hbm [resolvable:$true] %s423
          %426 = dma.vmem_to_hbm [thread:$0]  %s422, 16, %s424, %s411
        $region52: #{tpu_custom_call.1} parent=35 // pred_fallthru
          _
      $region36: #{tpu_custom_call.1} parent=5 // pred_fallthru
        _
      %p427 = scmp.le.s32.totalorder 2, %s17
      // Predicated region
      $region53: #{tpu_custom_call.1} parent=5 // pred_check
        %p428 = pneg %p427
      $region54: #{tpu_custom_call.1} parent=5 // pred_check_branch
        %430 = sbr.rel (%p428) target = $region56
      $region55: #{tpu_custom_call.1} parent=5 // pred_region
        %s431 = ssub.s32 %s17, 2
        // Predicated region
        $region57: #{tpu_custom_call.1} parent=55 // pred_check
          %p432 = pneg %p135
        $region58: #{tpu_custom_call.1} parent=55 // pred_check_branch
          %434 = sbr.rel (%p432) target = $region60
        $region59: #{tpu_custom_call.1} parent=55 // pred_region
          %s435 = sand.u32 %s120, 1
          %s436 = scalar_lea.sflag [#allocation4], %s435
          %s437 = sand.u32 %s120, 1
          %s438 = scalar_lea.vmem [#allocation8], %s437
          %440 = dma.done %s436, 16
        $region60: #{tpu_custom_call.1} parent=55 // pred_fallthru
          _
      $region56: #{tpu_custom_call.1} parent=5 // pred_fallthru
        _
    $region6: #{tpu_custom_call.1} parent=1 // loop_footer
      %s21 = sadd.s32 1, %s17
    $region7: #{tpu_custom_call.1} parent=1 // loop_footer_branch
      %16 = sbr.rel target = $region3
    $region8: #{tpu_custom_call.1} parent=1 // loop_exit
      _
    %441 = vsyncpa [#allocation3], 1
    %s442 = scalar_lea.sflag [#allocation3], 1
    %443 = vsyncpa %s442, 1
    %444 = vsyncpa [#allocation6], 1
    %445 = vsyncpa [#allocation4], 1
    %s446 = scalar_lea.sflag [#allocation4], 1
    %447 = vsyncpa %s446, 1

</llo_original>
